<compile_context>
chip_gen: v6e
topology: v6e:2x2x1
jax: 0.10.0
libtpu: 0.0.40
codegen_flags: <defaults>
</compile_context>

<pallas_src>
import math
from functools import partial

import jax
import jax.numpy as jnp
from jax.experimental import pallas as pl
from jax.experimental.pallas import tpu as pltpu


def arcface_kernel(targets_ref, feat_ref, w_ref, out_ref, *,
                   margin, scale, tile_c, compute_dtype):
    # targets_ref: (tile_b, 1) int32
    # feat_ref:    (tile_b, D) compute_dtype, already L2-normalized
    # w_ref:       (tile_c, D) stored weight dtype (f32 or bf16)
    # out_ref:     (tile_b, tile_c) float32
    eps = 1e-12

    # Normalize this weight tile in f32 (one EUP rsqrt, no divide).
    w = w_ref[...].astype(jnp.float32)
    ss = jnp.sum(w * w, axis=-1, keepdims=True)
    w_norm = w * jax.lax.rsqrt(jnp.maximum(ss, eps * eps))

    # cos_theta = f_norm @ w_norm^T without materializing a transpose:
    # contract the last dim of both operands on the MXU, f32 accumulation.
    cos_theta = jax.lax.dot_general(
        feat_ref[...].astype(compute_dtype),
        w_norm.astype(compute_dtype),
        dimension_numbers=(((1,), (1,)), ((), ())),
        preferred_element_type=jnp.float32,
    )
    cos_theta = jnp.clip(cos_theta, -1.0, 1.0)

    # one-hot(target) restricted to this class tile.
    tb, tc = out_ref.shape
    col_ids = jax.lax.broadcasted_iota(jnp.int32, (tb, tc), 1)
    col_ids = col_ids + pl.program_id(0) * tile_c  # grid dim 0 = class axis
    is_target = col_ids == targets_ref[...]        # (tb, tc) via (tb,1) bcast

    # cos(acos(x) + m) = x*cos(m) - sqrt(1-x^2)*sin(m); scale folded in.
    sin_theta = jnp.sqrt(jnp.maximum(1.0 - cos_theta * cos_theta, 0.0))
    a = scale * math.cos(margin)
    b = scale * math.sin(margin)
    with_margin = cos_theta * a - sin_theta * b
    plain = cos_theta * scale

    out_ref[...] = jnp.where(is_target, with_margin, plain).astype(out_ref.dtype)


def arcface_forward(features, weights, targets, *, margin=0.5, scale=20.0,
                    tile_c=512, tile_b=256,
                    compute_dtype=jnp.float32, weights_dtype=None):
    """ArcFace logits = scale * cos(acos(cos_sim(f, W)) + margin * onehot)."""
    B, D = features.shape
    C, D2 = weights.shape
    assert D == D2

    eps = 1e-12

    # Hoist feature normalization out of the class-tile loop (done once).
    f32 = features.astype(jnp.float32)
    fss = jnp.sum(f32 * f32, axis=-1, keepdims=True)
    f_norm = (f32 * jax.lax.rsqrt(jnp.maximum(fss, eps * eps))).astype(compute_dtype)

    # Optional bf16 weight storage: halves the dominant HBM stream.
    if weights_dtype is not None:
        weights = weights.astype(weights_dtype)
    w_itemsize = jnp.dtype(weights.dtype).itemsize
    c_itemsize = jnp.dtype(compute_dtype).itemsize

    targets2d = targets.astype(jnp.int32).reshape(B, 1)

    # --- batch tile: multiple of 8 dividing B, or the full batch ------------
    if B <= tile_b or B % 8 != 0:
        tile_b = B
    else:
        tile_b = min(tile_b - tile_b % 8, B)
        while B % tile_b:
            tile_b -= 8
    num_b = B // tile_b

    # --- class tile: multiple of 128, clamped by an explicit VMEM budget ----
    c_pad128 = ((C + 127) // 128) * 128
    tile_c = max(128, min((tile_c // 128) * 128, c_pad128))

    def vmem_bytes(tc):
        return (2 * tc * D * w_itemsize        # weight tile (double-buffered)
                + 2 * tile_b * D * c_itemsize  # feature tile
                + 2 * tile_b * tc * 4          # output tile (f32)
                + 2 * tile_b * 128 * 4)        # targets tile (lane-padded)

    VMEM_BUDGET = 40 * 1024 * 1024             # safe under v7x's 64 MiB VMEM
    while tile_c > 128 and vmem_bytes(tile_c) > VMEM_BUDGET:
        tile_c -= 128

    num_c = pl.cdiv(C, tile_c)
    C_pad = num_c * tile_c
    if C_pad != C:
        # Zero rows normalize to zero -> cos_theta 0, never the target.
        weights = jnp.pad(weights, ((0, C_pad - C), (0, 0)))

    kernel = partial(arcface_kernel, margin=margin, scale=scale,
                     tile_c=tile_c, compute_dtype=compute_dtype)

    cost = pl.CostEstimate(
        flops=2 * B * C_pad * D,
        transcendentals=B * C_pad + C_pad,     # sin_theta sqrt + weight rsqrt
        bytes_accessed=(B * D * c_itemsize + C_pad * D * w_itemsize
                        + B * C_pad * 4 + B * 4),
    )

    out = pl.pallas_call(
        kernel,
        out_shape=jax.ShapeDtypeStruct((B, C_pad), jnp.float32),
        grid_spec=pltpu.PrefetchScalarGridSpec(
            num_scalar_prefetch=0,
            # class tiles outer, batch tiles inner: each weight tile (the big
            # HBM stream) is fetched once per full batch sweep.
            grid=(num_c, num_b),
            in_specs=[
                pl.BlockSpec((tile_b, 1), lambda j, i: (i, 0)),      # targets
                pl.BlockSpec((tile_b, D), lambda j, i: (i, 0)),      # features
                pl.BlockSpec((tile_c, D), lambda j, i: (j, 0)),      # weights
            ],
            out_specs=pl.BlockSpec((tile_b, tile_c), lambda j, i: (i, j)),
        ),
        compiler_params=pltpu.CompilerParams(
            dimension_semantics=("parallel", "parallel"),
            vmem_limit_bytes=min(
                max(32 * 1024 * 1024, int(vmem_bytes(tile_c) * 1.25) + (4 << 20)),
                56 * 1024 * 1024),
        ),
        cost_estimate=cost,
    )(targets2d, f_norm, weights)

    if C_pad != C:
        out = out[:, :C]
    return out


def arcface_reference(features, weights, targets, *, margin=0.5, scale=20.0):
    eps = 1e-12
    f = features / jnp.maximum(
        jnp.linalg.norm(features, axis=-1, keepdims=True), eps)
    w = weights / jnp.maximum(
        jnp.linalg.norm(weights, axis=-1, keepdims=True), eps)
    cos_theta = jnp.clip(f @ w.T, -1.0, 1.0)
    arc_cos = jnp.arccos(cos_theta)
    M = jax.nn.one_hot(targets, weights.shape[0]) * margin
    return jnp.cos(arc_cos + M) * scale


if __name__ == "__main__":
    B = 8            # batch
    D = 32           # in_features
    C = 256          # out_features
    margin, scale = 0.5, 20.0

    key = jax.random.PRNGKey(0)
    k_feat, k_w, k_tgt = jax.random.split(key, 3)

    features = jax.random.normal(k_feat, (B, D), dtype=jnp.float32)
    # xavier_normal_ init: std = sqrt(2 / (fan_in + fan_out))
    std = math.sqrt(2.0 / (D + C))
    weights = std * jax.random.normal(k_w, (C, D), dtype=jnp.float32)
    targets = jax.random.randint(k_tgt, (B,), 0, C, dtype=jnp.int32)

    ref = arcface_reference(features, weights, targets,
                            margin=margin, scale=scale)

    # Full-precision path: matches the reference tightly.
    logits = arcface_forward(features, weights, targets,
                             margin=margin, scale=scale)
    jax.block_until_ready(logits)
    assert logits.shape == (B, C)
    assert jnp.allclose(logits, ref, atol=1e-4, rtol=1e-4)

    # bf16 weight-stream / bf16 MXU path (halves HBM weight traffic); looser
    # tolerance reflects bf16 rounding of cos_theta before the scale of 20.
    logits_bf16 = arcface_forward(features, weights, targets,
                                  margin=margin, scale=scale,
                                  compute_dtype=jnp.bfloat16,
                                  weights_dtype=jnp.bfloat16)
    jax.block_until_ready(logits_bf16)
    assert logits_bf16.shape == (B, C)
    assert jnp.allclose(logits_bf16, ref, atol=0.5, rtol=5e-2)

    print("KERNEL_OK")
</pallas_src>

<mosaic_0001>
module attributes {stable_mosaic.version = 11 : i64} {
  func.func @arcface_kernel(%arg0: i32, %arg1: i32, %arg2: memref<8x1xi32, #tpu.memory_space<vmem>>, %arg3: memref<8x32xf32, #tpu.memory_space<vmem>>, %arg4: memref<256x32xf32, #tpu.memory_space<vmem>>, %arg5: memref<8x256xf32, #tpu.memory_space<vmem>>) attributes {dimension_semantics = [#tpu.dimension_semantics<parallel>, #tpu.dimension_semantics<parallel>], iteration_bounds = array<i64: 1, 1>, scalar_prefetch = 0 : i64, scratch_operands = 0 : i64, tpu.core_type = #tpu.core_type<tc>, window_params = [{transform_indices = @transform_0, window_bounds = array<i64: 8, 1>}, {transform_indices = @transform_1, window_bounds = array<i64: 8, 32>}, {transform_indices = @transform_2, window_bounds = array<i64: 256, 32>}, {transform_indices = @transform_3, window_bounds = array<i64: 8, 256>}]} {
    %c0 = arith.constant 0 : index
    %c0_0 = arith.constant 0 : index
    %0 = vector.load %arg4[%c0, %c0_0] : memref<256x32xf32, #tpu.memory_space<vmem>>, vector<256x32xf32>
    %1 = arith.mulf %0, %0 : vector<256x32xf32>
    %cst = arith.constant dense<0.000000e+00> : vector<256xf32>
    %2 = vector.multi_reduction <add>, %1, %cst [1] : vector<256x32xf32> to vector<256xf32>
    %3 = vector.shape_cast %2 : vector<256xf32> to vector<256x1xf32>
    %cst_1 = arith.constant 1.000000e-24 : f32
    %4 = vector.broadcast %cst_1 : f32 to vector<256x1xf32>
    %5 = arith.maximumf %3, %4 : vector<256x1xf32>
    %6 = math.rsqrt %5 : vector<256x1xf32>
    %7 = vector.broadcast %6 : vector<256x1xf32> to vector<256x32xf32>
    %8 = arith.mulf %0, %7 : vector<256x32xf32>
    %c0_2 = arith.constant 0 : index
    %c0_3 = arith.constant 0 : index
    %9 = vector.load %arg3[%c0_2, %c0_3] : memref<8x32xf32, #tpu.memory_space<vmem>>, vector<8x32xf32>
    %cst_4 = arith.constant dense<0.000000e+00> : vector<8x256xf32>
    %10 = tpu.matmul %9, %8, %cst_4 {dimension_numbers = #tpu.dot_dimension_numbers<[1], [1], [0], [0], [0, 0, 1, 0], [], []>} : vector<8x32xf32>, vector<256x32xf32>, vector<8x256xf32> -> vector<8x256xf32>
    %cst_5 = arith.constant -1.000000e+00 : f32
    %cst_6 = arith.constant 1.000000e+00 : f32
    %11 = vector.broadcast %cst_5 : f32 to vector<8x256xf32>
    %12 = arith.maximumf %11, %10 : vector<8x256xf32>
    %13 = vector.broadcast %cst_6 : f32 to vector<8x256xf32>
    %14 = arith.minimumf %13, %12 : vector<8x256xf32>
    %15 = tpu.iota {dimensions = array<i32: 1>} : vector<8x256xi32>
    %c256_i32 = arith.constant 256 : i32
    %16 = arith.muli %arg0, %c256_i32 : i32
    %17 = vector.broadcast %16 : i32 to vector<8x256xi32>
    %18 = arith.addi %15, %17 : vector<8x256xi32>
    %c0_7 = arith.constant 0 : index
    %c0_8 = arith.constant 0 : index
    %19 = vector.load %arg2[%c0_7, %c0_8] : memref<8x1xi32, #tpu.memory_space<vmem>>, vector<8x1xi32>
    %20 = vector.broadcast %19 : vector<8x1xi32> to vector<8x256xi32>
    %21 = arith.cmpi eq, %18, %20 : vector<8x256xi32>
    %22 = arith.mulf %14, %14 : vector<8x256xf32>
    %cst_9 = arith.constant 1.000000e+00 : f32
    %23 = vector.broadcast %cst_9 : f32 to vector<8x256xf32>
    %24 = arith.subf %23, %22 : vector<8x256xf32>
    %cst_10 = arith.constant 0.000000e+00 : f32
    %25 = vector.broadcast %cst_10 : f32 to vector<8x256xf32>
    %26 = arith.maximumf %24, %25 : vector<8x256xf32>
    %27 = math.sqrt %26 : vector<8x256xf32>
    %cst_11 = arith.constant 17.551651 : f32
    %28 = vector.broadcast %cst_11 : f32 to vector<8x256xf32>
    %29 = arith.mulf %14, %28 : vector<8x256xf32>
    %cst_12 = arith.constant 9.58851051 : f32
    %30 = vector.broadcast %cst_12 : f32 to vector<8x256xf32>
    %31 = arith.mulf %27, %30 : vector<8x256xf32>
    %32 = arith.subf %29, %31 : vector<8x256xf32>
    %cst_13 = arith.constant 2.000000e+01 : f32
    %33 = vector.broadcast %cst_13 : f32 to vector<8x256xf32>
    %34 = arith.mulf %14, %33 : vector<8x256xf32>
    %35 = arith.select %21, %32, %34 : vector<8x256xi1>, vector<8x256xf32>
    %c0_14 = arith.constant 0 : index
    %c0_15 = arith.constant 0 : index
    %36 = vector.load %arg5[%c0_14, %c0_15] : memref<8x256xf32, #tpu.memory_space<vmem>>, vector<8x256xf32>
    tpu.vector_store %arg5[%c0_14, %c0_15], %35 {strides = array<i32>} : memref<8x256xf32, #tpu.memory_space<vmem>>, vector<8x256xf32>,
    return
  }
  func.func @transform_0(%arg0: i32, %arg1: i32) -> (i32, i32) {
    %c0_i32 = arith.constant 0 : i32
    %c0_i32_0 = arith.constant 0 : i32
    return %arg1, %c0_i32 : i32, i32
  }
  func.func @transform_1(%arg0: i32, %arg1: i32) -> (i32, i32) {
    %c0_i32 = arith.constant 0 : i32
    %c0_i32_0 = arith.constant 0 : i32
    return %arg1, %c0_i32 : i32, i32
  }
  func.func @transform_2(%arg0: i32, %arg1: i32) -> (i32, i32) {
    %c0_i32 = arith.constant 0 : i32
    %c0_i32_0 = arith.constant 0 : i32
    return %arg0, %c0_i32 : i32, i32
  }
  func.func @transform_3(%arg0: i32, %arg1: i32) -> (i32, i32) {
    %c0_i32 = arith.constant 0 : i32
    return %arg1, %arg0 : i32, i32
  }
}

</mosaic_0001>

<llo_original>
// kernel: tpu_custom_call.1
$region0: #{tpu_custom_call.1}
  #allocation0 [shape = 'u32[]', space=smem, size = 0x4, offset = 0x4, fixed_abs, tag = 'smem constant byte address 0x4 - core index']
  #allocation1 [shape = 'u32[144,128]{1,0:T(1,128)}', space=vmem, size = 0x12000, scoped, tag = 'internal scratch']
  %s0 = inlined_call_operand.vmem [shape: s32[8,1], index: 0, kind: input, shape index: {}]
  %s1 = inlined_call_operand.vmem [shape: f32[8,32], index: 1, kind: input, shape index: {}]
  %s2 = inlined_call_operand.vmem [shape: f32[256,32], index: 2, kind: input, shape index: {}]
  %s3 = inlined_call_operand.hbm [shape: f32[8,256], index: 3, kind: output, shape index: {}]
  %s4 = sld [smem:[#allocation0]]
  $region22: #{tpu_custom_call.1} parent=0
    _
  %s6 = ssub.s32 1, %s4
  %s7 = scalar_select 0, %s6, %s4
  $region1: #{tpu_custom_call.1} parent=0
    #allocation2 [shape = 'u8[8192]{0}', space=vmem, size = 0x2000, scoped, tag = 'output window, operand 0, single buffered']
    #allocation3 [shape = 's32[1]{0}', space=sflag, size = 0x4, scoped, tag = 'scoped memory for tpu_custom_call.1']
    %8 = vsyncpa [#allocation3], 0
    // Predicated region
    $region2: #{tpu_custom_call.1} parent=1 // pred_check
      _
    $region3: #{tpu_custom_call.1} parent=1 // pred_check_branch
      %10 = sbr.rel (0) target = $region5
    $region4: #{tpu_custom_call.1} parent=1 // pred_region
      _
    $region5: #{tpu_custom_call.1} parent=1 // pred_fallthru
      _
    // Predicated region
    $region6: #{tpu_custom_call.1} parent=1 // pred_check
      _
    $region7: #{tpu_custom_call.1} parent=1 // pred_check_branch
      %12 = sbr.rel (0) target = $region9
    $region8: #{tpu_custom_call.1} parent=1 // pred_region
      _
    $region9: #{tpu_custom_call.1} parent=1 // pred_fallthru
      _
    // Predicated region
    $region10: #{tpu_custom_call.1} parent=1 // pred_check
      _
    $region11: #{tpu_custom_call.1} parent=1 // pred_check_branch
      %14 = sbr.rel (0) target = $region13
    $region12: #{tpu_custom_call.1} parent=1 // pred_region
      _
    $region13: #{tpu_custom_call.1} parent=1 // pred_fallthru
      _
    %v15 = vld [vmem:[%s2] sm:$0xff]
    %v16 = vld [vmem:[%s2 + $0x8] sm:$0xff]
    %v17 = vld [vmem:[%s2 + $0x10] sm:$0xff]
    %v18 = vld [vmem:[%s2 + $0x18] sm:$0xff]
    %v19 = vld [vmem:[%s2 + $0x20] sm:$0xff]
    %v20 = vld [vmem:[%s2 + $0x28] sm:$0xff]
    %v21 = vld [vmem:[%s2 + $0x30] sm:$0xff]
    %v22 = vld [vmem:[%s2 + $0x38] sm:$0xff]
    %v23 = vld [vmem:[%s2 + $0x40] sm:$0xff]
    %v24 = vld [vmem:[%s2 + $0x48] sm:$0xff]
    %v25 = vld [vmem:[%s2 + $0x50] sm:$0xff]
    %v26 = vld [vmem:[%s2 + $0x58] sm:$0xff]
    %v27 = vld [vmem:[%s2 + $0x60] sm:$0xff]
    %v28 = vld [vmem:[%s2 + $0x68] sm:$0xff]
    %v29 = vld [vmem:[%s2 + $0x70] sm:$0xff]
    %v30 = vld [vmem:[%s2 + $0x78] sm:$0xff]
    %v31 = vld [vmem:[%s2 + $0x80] sm:$0xff]
    %v32 = vld [vmem:[%s2 + $0x88] sm:$0xff]
    %v33 = vld [vmem:[%s2 + $0x90] sm:$0xff]
    %v34 = vld [vmem:[%s2 + $0x98] sm:$0xff]
    %v35 = vld [vmem:[%s2 + $0xa0] sm:$0xff]
    %v36 = vld [vmem:[%s2 + $0xa8] sm:$0xff]
    %v37 = vld [vmem:[%s2 + $0xb0] sm:$0xff]
    %v38 = vld [vmem:[%s2 + $0xb8] sm:$0xff]
    %v39 = vld [vmem:[%s2 + $0xc0] sm:$0xff]
    %v40 = vld [vmem:[%s2 + $0xc8] sm:$0xff]
    %v41 = vld [vmem:[%s2 + $0xd0] sm:$0xff]
    %v42 = vld [vmem:[%s2 + $0xd8] sm:$0xff]
    %v43 = vld [vmem:[%s2 + $0xe0] sm:$0xff]
    %v44 = vld [vmem:[%s2 + $0xe8] sm:$0xff]
    %v45 = vld [vmem:[%s2 + $0xf0] sm:$0xff]
    %v46 = vld [vmem:[%s2 + $0xf8] sm:$0xff]
    %v47 = vmul.f32 %v15, %v15
    %v48 = vmul.f32 %v16, %v16
    %v49 = vmul.f32 %v17, %v17
    %v50 = vmul.f32 %v18, %v18
    %v51 = vmul.f32 %v19, %v19
    %v52 = vmul.f32 %v20, %v20
    %v53 = vmul.f32 %v21, %v21
    %v54 = vmul.f32 %v22, %v22
    %v55 = vmul.f32 %v23, %v23
    %v56 = vmul.f32 %v24, %v24
    %v57 = vmul.f32 %v25, %v25
    %v58 = vmul.f32 %v26, %v26
    %v59 = vmul.f32 %v27, %v27
    %v60 = vmul.f32 %v28, %v28
    %v61 = vmul.f32 %v29, %v29
    %v62 = vmul.f32 %v30, %v30
    %v63 = vmul.f32 %v31, %v31
    %v64 = vmul.f32 %v32, %v32
    %v65 = vmul.f32 %v33, %v33
    %v66 = vmul.f32 %v34, %v34
    %v67 = vmul.f32 %v35, %v35
    %v68 = vmul.f32 %v36, %v36
    %v69 = vmul.f32 %v37, %v37
    %v70 = vmul.f32 %v38, %v38
    %v71 = vmul.f32 %v39, %v39
    %v72 = vmul.f32 %v40, %v40
    %v73 = vmul.f32 %v41, %v41
    %v74 = vmul.f32 %v42, %v42
    %v75 = vmul.f32 %v43, %v43
    %v76 = vmul.f32 %v44, %v44
    %v77 = vmul.f32 %v45, %v45
    %v78 = vmul.f32 %v46, %v46
    %vm79 = vcmask 261120
    %v80 = vsel %vm79, %v47, 0.0
    %81 = vadd.xlane.f32.xlu0 %v80
    %v82 = vpop.xlane.xlu0 %81
    %v83 = vsel %vm79, %v48, 0.0
    %84 = vadd.xlane.f32.xlu0 %v83
    %v85 = vpop.xlane.xlu0 %84
    %v86 = vsel %vm79, %v49, 0.0
    %87 = vadd.xlane.f32.xlu0 %v86
    %v88 = vpop.xlane.xlu0 %87
    %v89 = vsel %vm79, %v50, 0.0
    %90 = vadd.xlane.f32.xlu0 %v89
    %v91 = vpop.xlane.xlu0 %90
    %v92 = vsel %vm79, %v51, 0.0
    %93 = vadd.xlane.f32.xlu0 %v92
    %v94 = vpop.xlane.xlu0 %93
    %v95 = vsel %vm79, %v52, 0.0
    %96 = vadd.xlane.f32.xlu0 %v95
    %v97 = vpop.xlane.xlu0 %96
    %v98 = vsel %vm79, %v53, 0.0
    %99 = vadd.xlane.f32.xlu0 %v98
    %v100 = vpop.xlane.xlu0 %99
    %v101 = vsel %vm79, %v54, 0.0
    %102 = vadd.xlane.f32.xlu0 %v101
    %v103 = vpop.xlane.xlu0 %102
    %v104 = vsel %vm79, %v55, 0.0
    %105 = vadd.xlane.f32.xlu0 %v104
    %v106 = vpop.xlane.xlu0 %105
    %v107 = vsel %vm79, %v56, 0.0
    %108 = vadd.xlane.f32.xlu0 %v107
    %v109 = vpop.xlane.xlu0 %108
    %v110 = vsel %vm79, %v57, 0.0
    %111 = vadd.xlane.f32.xlu0 %v110
    %v112 = vpop.xlane.xlu0 %111
    %v113 = vsel %vm79, %v58, 0.0
    %114 = vadd.xlane.f32.xlu0 %v113
    %v115 = vpop.xlane.xlu0 %114
    %v116 = vsel %vm79, %v59, 0.0
    %117 = vadd.xlane.f32.xlu0 %v116
    %v118 = vpop.xlane.xlu0 %117
    %v119 = vsel %vm79, %v60, 0.0
    %120 = vadd.xlane.f32.xlu0 %v119
    %v121 = vpop.xlane.xlu0 %120
    %v122 = vsel %vm79, %v61, 0.0
    %123 = vadd.xlane.f32.xlu0 %v122
    %v124 = vpop.xlane.xlu0 %123
    %v125 = vsel %vm79, %v62, 0.0
    %126 = vadd.xlane.f32.xlu0 %v125
    %v127 = vpop.xlane.xlu0 %126
    %v128 = vsel %vm79, %v63, 0.0
    %129 = vadd.xlane.f32.xlu0 %v128
    %v130 = vpop.xlane.xlu0 %129
    %v131 = vsel %vm79, %v64, 0.0
    %132 = vadd.xlane.f32.xlu0 %v131
    %v133 = vpop.xlane.xlu0 %132
    %v134 = vsel %vm79, %v65, 0.0
    %135 = vadd.xlane.f32.xlu0 %v134
    %v136 = vpop.xlane.xlu0 %135
    %v137 = vsel %vm79, %v66, 0.0
    %138 = vadd.xlane.f32.xlu0 %v137
    %v139 = vpop.xlane.xlu0 %138
    %v140 = vsel %vm79, %v67, 0.0
    %141 = vadd.xlane.f32.xlu0 %v140
    %v142 = vpop.xlane.xlu0 %141
    %v143 = vsel %vm79, %v68, 0.0
    %144 = vadd.xlane.f32.xlu0 %v143
    %v145 = vpop.xlane.xlu0 %144
    %v146 = vsel %vm79, %v69, 0.0
    %147 = vadd.xlane.f32.xlu0 %v146
    %v148 = vpop.xlane.xlu0 %147
    %v149 = vsel %vm79, %v70, 0.0
    %150 = vadd.xlane.f32.xlu0 %v149
    %v151 = vpop.xlane.xlu0 %150
    %v152 = vsel %vm79, %v71, 0.0
    %153 = vadd.xlane.f32.xlu0 %v152
    %v154 = vpop.xlane.xlu0 %153
    %v155 = vsel %vm79, %v72, 0.0
    %156 = vadd.xlane.f32.xlu0 %v155
    %v157 = vpop.xlane.xlu0 %156
    %v158 = vsel %vm79, %v73, 0.0
    %159 = vadd.xlane.f32.xlu0 %v158
    %v160 = vpop.xlane.xlu0 %159
    %v161 = vsel %vm79, %v74, 0.0
    %162 = vadd.xlane.f32.xlu0 %v161
    %v163 = vpop.xlane.xlu0 %162
    %v164 = vsel %vm79, %v75, 0.0
    %165 = vadd.xlane.f32.xlu0 %v164
    %v166 = vpop.xlane.xlu0 %165
    %v167 = vsel %vm79, %v76, 0.0
    %168 = vadd.xlane.f32.xlu0 %v167
    %v169 = vpop.xlane.xlu0 %168
    %v170 = vsel %vm79, %v77, 0.0
    %171 = vadd.xlane.f32.xlu0 %v170
    %v172 = vpop.xlane.xlu0 %171
    %v173 = vsel %vm79, %v78, 0.0
    %174 = vadd.xlane.f32.xlu0 %v173
    %v175 = vpop.xlane.xlu0 %174
    %v176 = vmax.f32 %v82, 1e-24
    %v177 = vmax.f32 %v85, 1e-24
    %v178 = vmax.f32 %v88, 1e-24
    %v179 = vmax.f32 %v91, 1e-24
    %v180 = vmax.f32 %v94, 1e-24
    %v181 = vmax.f32 %v97, 1e-24
    %v182 = vmax.f32 %v100, 1e-24
    %v183 = vmax.f32 %v103, 1e-24
    %v184 = vmax.f32 %v106, 1e-24
    %v185 = vmax.f32 %v109, 1e-24
    %v186 = vmax.f32 %v112, 1e-24
    %v187 = vmax.f32 %v115, 1e-24
    %v188 = vmax.f32 %v118, 1e-24
    %v189 = vmax.f32 %v121, 1e-24
    %v190 = vmax.f32 %v124, 1e-24
    %v191 = vmax.f32 %v127, 1e-24
    %v192 = vmax.f32 %v130, 1e-24
    %v193 = vmax.f32 %v133, 1e-24
    %v194 = vmax.f32 %v136, 1e-24
    %v195 = vmax.f32 %v139, 1e-24
    %v196 = vmax.f32 %v142, 1e-24
    %v197 = vmax.f32 %v145, 1e-24
    %v198 = vmax.f32 %v148, 1e-24
    %v199 = vmax.f32 %v151, 1e-24
    %v200 = vmax.f32 %v154, 1e-24
    %v201 = vmax.f32 %v157, 1e-24
    %v202 = vmax.f32 %v160, 1e-24
    %v203 = vmax.f32 %v163, 1e-24
    %v204 = vmax.f32 %v166, 1e-24
    %v205 = vmax.f32 %v169, 1e-24
    %v206 = vmax.f32 %v172, 1e-24
    %v207 = vmax.f32 %v175, 1e-24
    %v208 = vrsqrt.pop %v176
    %v209 = vrsqrt.pop %v177
    %v210 = vrsqrt.pop %v178
    %v211 = vrsqrt.pop %v179
    %v212 = vrsqrt.pop %v180
    %v213 = vrsqrt.pop %v181
    %v214 = vrsqrt.pop %v182
    %v215 = vrsqrt.pop %v183
    %v216 = vrsqrt.pop %v184
    %v217 = vrsqrt.pop %v185
    %v218 = vrsqrt.pop %v186
    %v219 = vrsqrt.pop %v187
    %v220 = vrsqrt.pop %v188
    %v221 = vrsqrt.pop %v189
    %v222 = vrsqrt.pop %v190
    %v223 = vrsqrt.pop %v191
    %v224 = vrsqrt.pop %v192
    %v225 = vrsqrt.pop %v193
    %v226 = vrsqrt.pop %v194
    %v227 = vrsqrt.pop %v195
    %v228 = vrsqrt.pop %v196
    %v229 = vrsqrt.pop %v197
    %v230 = vrsqrt.pop %v198
    %v231 = vrsqrt.pop %v199
    %v232 = vrsqrt.pop %v200
    %v233 = vrsqrt.pop %v201
    %v234 = vrsqrt.pop %v202
    %v235 = vrsqrt.pop %v203
    %v236 = vrsqrt.pop %v204
    %v237 = vrsqrt.pop %v205
    %v238 = vrsqrt.pop %v206
    %v239 = vrsqrt.pop %v207
    %v240 = vmul.f32 %v15, %v208
    %v241 = vmul.f32 %v16, %v209
    %v242 = vmul.f32 %v17, %v210
    %v243 = vmul.f32 %v18, %v211
    %v244 = vmul.f32 %v19, %v212
    %v245 = vmul.f32 %v20, %v213
    %v246 = vmul.f32 %v21, %v214
    %v247 = vmul.f32 %v22, %v215
    %v248 = vmul.f32 %v23, %v216
    %v249 = vmul.f32 %v24, %v217
    %v250 = vmul.f32 %v25, %v218
    %v251 = vmul.f32 %v26, %v219
    %v252 = vmul.f32 %v27, %v220
    %v253 = vmul.f32 %v28, %v221
    %v254 = vmul.f32 %v29, %v222
    %v255 = vmul.f32 %v30, %v223
    %v256 = vmul.f32 %v31, %v224
    %v257 = vmul.f32 %v32, %v225
    %v258 = vmul.f32 %v33, %v226
    %v259 = vmul.f32 %v34, %v227
    %v260 = vmul.f32 %v35, %v228
    %v261 = vmul.f32 %v36, %v229
    %v262 = vmul.f32 %v37, %v230
    %v263 = vmul.f32 %v38, %v231
    %v264 = vmul.f32 %v39, %v232
    %v265 = vmul.f32 %v40, %v233
    %v266 = vmul.f32 %v41, %v234
    %v267 = vmul.f32 %v42, %v235
    %v268 = vmul.f32 %v43, %v236
    %v269 = vmul.f32 %v44, %v237
    %v270 = vmul.f32 %v45, %v238
    %v271 = vmul.f32 %v46, %v239
    %v272 = vld [vmem:[%s1] sm:$0xff]
    %v274 = vsel %vm79, %v272, 0
    %v277 = vsel %vm79, %v240, 0
    %v280 = vsel %vm79, %v241, 0
    %v283 = vsel %vm79, %v242, 0
    %v286 = vsel %vm79, %v243, 0
    %v289 = vsel %vm79, %v244, 0
    %v292 = vsel %vm79, %v245, 0
    %v295 = vsel %vm79, %v246, 0
    %v298 = vsel %vm79, %v247, 0
    %v301 = vsel %vm79, %v248, 0
    %v304 = vsel %vm79, %v249, 0
    %v307 = vsel %vm79, %v250, 0
    %v310 = vsel %vm79, %v251, 0
    %v313 = vsel %vm79, %v252, 0
    %v316 = vsel %vm79, %v253, 0
    %v319 = vsel %vm79, %v254, 0
    %v322 = vsel %vm79, %v255, 0
    %v325 = vsel %vm79, %v256, 0
    %v328 = vsel %vm79, %v257, 0
    %v331 = vsel %vm79, %v258, 0
    %v334 = vsel %vm79, %v259, 0
    %v337 = vsel %vm79, %v260, 0
    %v340 = vsel %vm79, %v261, 0
    %v343 = vsel %vm79, %v262, 0
    %v346 = vsel %vm79, %v263, 0
    %v349 = vsel %vm79, %v264, 0
    %v352 = vsel %vm79, %v265, 0
    %v355 = vsel %vm79, %v266, 0
    %v358 = vsel %vm79, %v267, 0
    %v361 = vsel %vm79, %v268, 0
    %v364 = vsel %vm79, %v269, 0
    %v367 = vsel %vm79, %v270, 0
    %v370 = vsel %vm79, %v271, 0
    %372 = vmatprep.subr.mxu0 0.0
    %373 = vmatpush1.xpose.msra.mxu0 %v322
    %374 = vmatprep.subr.mxu0 0.0
    %375 = vmatpush1.xpose.msra.mxu0 %v319
    %376 = vmatprep.subr.mxu0 0.0
    %377 = vmatpush1.xpose.msra.mxu0 %v316
    %378 = vmatprep.subr.mxu0 0.0
    %379 = vmatpush1.xpose.msra.mxu0 %v313
    %380 = vmatprep.subr.mxu0 0.0
    %381 = vmatpush1.xpose.msra.mxu0 %v310
    %382 = vmatprep.subr.mxu0 0.0
    %383 = vmatpush1.xpose.msra.mxu0 %v307
    %384 = vmatprep.subr.mxu0 0.0
    %385 = vmatpush1.xpose.msra.mxu0 %v304
    %386 = vmatprep.subr.mxu0 0.0
    %387 = vmatpush1.xpose.msra.mxu0 %v301
    %388 = vmatprep.subr.mxu0 0.0
    %389 = vmatpush1.xpose.msra.mxu0 %v298
    %390 = vmatprep.subr.mxu0 0.0
    %391 = vmatpush1.xpose.msra.mxu0 %v295
    %392 = vmatprep.subr.mxu0 0.0
    %393 = vmatpush1.xpose.msra.mxu0 %v292
    %394 = vmatprep.subr.mxu0 0.0
    %395 = vmatpush1.xpose.msra.mxu0 %v289
    %396 = vmatprep.subr.mxu0 0.0
    %397 = vmatpush1.xpose.msra.mxu0 %v286
    %398 = vmatprep.subr.mxu0 0.0
    %399 = vmatpush1.xpose.msra.mxu0 %v283
    %400 = vmatprep.subr.mxu0 0.0
    %401 = vmatpush1.xpose.msra.mxu0 %v280
    %402 = vmatprep.subr.mxu0 0.0
    %403 = vmatpush1.xpose.msra.mxu0 %v277
    %404 = vmatprep.subr.mxu0 0.0
    %405 = vmatpush2.xpose.msra.mxu0 %v370
    %406 = vmatprep.subr.mxu0 0.0
    %407 = vmatpush2.xpose.msra.mxu0 %v367
    %408 = vmatprep.subr.mxu0 0.0
    %409 = vmatpush2.xpose.msra.mxu0 %v364
    %410 = vmatprep.subr.mxu0 0.0
    %411 = vmatpush2.xpose.msra.mxu0 %v361
    %412 = vmatprep.subr.mxu0 0.0
    %413 = vmatpush2.xpose.msra.mxu0 %v358
    %414 = vmatprep.subr.mxu0 0.0
    %415 = vmatpush2.xpose.msra.mxu0 %v355
    %416 = vmatprep.subr.mxu0 0.0
    %417 = vmatpush2.xpose.msra.mxu0 %v352
    %418 = vmatprep.subr.mxu0 0.0
    %419 = vmatpush2.xpose.msra.mxu0 %v349
    %420 = vmatprep.subr.mxu0 0.0
    %421 = vmatpush2.xpose.msra.mxu0 %v346
    %422 = vmatprep.subr.mxu0 0.0
    %423 = vmatpush2.xpose.msra.mxu0 %v343
    %424 = vmatprep.subr.mxu0 0.0
    %425 = vmatpush2.xpose.msra.mxu0 %v340
    %426 = vmatprep.subr.mxu0 0.0
    %427 = vmatpush2.xpose.msra.mxu0 %v337
    %428 = vmatprep.subr.mxu0 0.0
    %429 = vmatpush2.xpose.msra.mxu0 %v334
    %430 = vmatprep.subr.mxu0 0.0
    %431 = vmatpush2.xpose.msra.mxu0 %v331
    %432 = vmatprep.subr.mxu0 0.0
    %433 = vmatpush2.xpose.msra.mxu0 %v328
    %434 = vmatprep.subr.mxu0 0.0
    %435 = vmatpush2.xpose.msra.mxu0 %v325
    %436 = vmatprep.mubr.f32.mxu0 0.0
    %437 = vmatmul.mubr.f32.gmra.mxu0 %v274
    %v438 = vpop.f32.mrf.mxu0
    %v439 = vadd.f32 0.0, %v438
    %v440 = vpop.f32.mrf.mxu0
    %v441 = vadd.f32 0.0, %v440
    %442 = vdwg.mxu0
    %v443 = vmax.f32 %v439, -1.0
    %v444 = vmax.f32 %v441, -1.0
    %v445 = vmin.f32 %v443, 1.0
    %v446 = vmin.f32 %v444, 1.0
    %v447 = vlaneseq
    %v448 = vand.u32 %v447, 127
    %v449 = vadd.s32 %v448, 128
    %s450 = smul.u32 0, 256
    %v451 = vstv %s450
    %v452 = vadd.s32 %v448, %v451
    %v453 = vadd.s32 %v449, %v451
    %v454 = vld [vmem:[%s0] sm:$0xff]
    %455 = vset.pattern.permute.xlu0 0
    %456 = vperm.xlu0 %455, %v454
    %v457 = vpop.permute.xlu0 %456
    %vm458 = vcmp.eq.s32.totalorder %v452, %v457
    %vm459 = vcmp.eq.s32.totalorder %v453, %v457
    %v460 = vmul.f32 %v445, %v445
    %v461 = vmul.f32 %v446, %v446
    %v462 = vsub.f32 1.0, %v460
    %v463 = vsub.f32 1.0, %v461
    %v464 = vmax.f32 %v462, 0.0
    %v465 = vmax.f32 %v463, 0.0
    %v466 = vrsqrt.pop %v464
    %v467 = vmul.f32 %v464, %v466
    %vm468 = vcmp.eq.f32.partialorder %v464, inf
    %v469 = vsel %vm468, %v464, %v467
    %vm470 = vcmp.eq.f32.partialorder %v464, 0.0
    %v471 = vand.u32 %v464, 2147483648
    %v472 = vsel %vm470, %v471, %v469
    %v473 = vrsqrt.pop %v465
    %v474 = vmul.f32 %v465, %v473
    %vm475 = vcmp.eq.f32.partialorder %v465, inf
    %v476 = vsel %vm475, %v465, %v474
    %vm477 = vcmp.eq.f32.partialorder %v465, 0.0
    %v478 = vand.u32 %v465, 2147483648
    %v479 = vsel %vm477, %v478, %v476
    %v480 = vmul.f32 %v445, 17.551651
    %v481 = vmul.f32 %v446, 17.551651
    %v482 = vmul.f32 %v472, 9.5885105
    %v483 = vmul.f32 %v479, 9.5885105
    %v484 = vsub.f32 %v480, %v482
    %v485 = vsub.f32 %v481, %v483
    %v486 = vmul.f32 %v445, 20.0
    %v487 = vmul.f32 %v446, 20.0
    %v488 = vsel %vm458, %v484, %v486
    %v489 = vsel %vm459, %v485, %v487
    %490 = vst [vmem:[#allocation2] sm:$0xff] %v488
    %491 = vst [vmem:[#allocation2 + $0x8] sm:$0xff] %v489
    // Predicated region
    $region14: #{tpu_custom_call.1} parent=1 // pred_check
      _
    $region15: #{tpu_custom_call.1} parent=1 // pred_check_branch
      %493 = sbr.rel (0) target = $region17
    $region16: #{tpu_custom_call.1} parent=1 // pred_region
      %s495 = ssub.s32 256, 256
      %496 = vsyncadd [#allocation3], %s495
      %s498 = sshll.u32 [#allocation2], 4
      %s499 = int_to_ptr.vmem [resolvable:$true] %s498
      %501 = dma.vmem_to_hbm [thread:$0]  %s499, 256, %s3, [#allocation3]
    $region17: #{tpu_custom_call.1} parent=1 // pred_fallthru
      _
    // Predicated region
    $region18: #{tpu_custom_call.1} parent=1 // pred_check
      _
    $region19: #{tpu_custom_call.1} parent=1 // pred_check_branch
      %503 = sbr.rel (0) target = $region21
    $region20: #{tpu_custom_call.1} parent=1 // pred_region
      %504 = dma.done [#allocation3], 256
    $region21: #{tpu_custom_call.1} parent=1 // pred_fallthru
      _
    %505 = vsyncpa [#allocation3], 1

</llo_original>
